<compile_context>
chip_gen: v7x
topology: tpu7x:2x2x1
jax: 0.10.0
libtpu: 0.0.40
codegen_flags: <defaults>
</compile_context>

<pallas_src>
import functools

import jax
import jax.numpy as jnp
from jax.experimental import pallas as pl
from jax.experimental.pallas import tpu as pltpu

LANE = 128


# ------------------------------ Pallas kernel ------------------------------ #
def _fused_forward_kernel(x_ref, m1_ref, b1_ref, m2_ref, b2_ref,
                          wfc_ref, bfc_ref, wout_ref, bout_ref, o_ref):
    """conv1+ReLU -> conv2+ReLU -> fc+ReLU -> out as 4 chained MXU GEMMs.

    Matmul inputs are bf16; accumulation and the bias/ReLU epilogue are f32.
    All intermediate activations stay on-chip (never written back to HBM).
    """
    f32, bf16 = jnp.float32, jnp.bfloat16
    h = jnp.dot(x_ref[...], m1_ref[...], preferred_element_type=f32)
    h = jnp.maximum(h + b1_ref[...], 0.0)                       # conv1 + ReLU
    h = jnp.dot(h.astype(bf16), m2_ref[...], preferred_element_type=f32)
    h = jnp.maximum(h + b2_ref[...], 0.0)                       # conv2 + ReLU
    h = jnp.dot(h.astype(bf16), wfc_ref[...], preferred_element_type=f32)
    h = jnp.maximum(h + bfc_ref[...], 0.0)                      # fc + ReLU
    h = jnp.dot(h.astype(bf16), wout_ref[...], preferred_element_type=f32)
    o_ref[...] = (h + bout_ref[...]).astype(o_ref.dtype)        # out (lane-padded)


def fused_forward(x, kp, *, num_classes, block_m=256):
    """x: (N, C, H, W) f32.  kp: params from prepare_kernel_params()."""
    n = x.shape[0]
    x_flat = x.reshape(n, -1).astype(jnp.bfloat16)      # PyTorch (C,H,W) flatten
    d0 = x_flat.shape[1]
    n_pad = kp["wout"].shape[1]                         # lane-dense output width
    tm = n if n < block_m else block_m                  # batch-row tile

    def fullspec(a):
        return pl.BlockSpec(a.shape, lambda i: (0,) * a.ndim)

    weights = [kp[k] for k in
               ("m1", "b1", "m2", "b2", "wfc", "bfc", "wout", "bout")]

    out = pl.pallas_call(
        _fused_forward_kernel,
        out_shape=jax.ShapeDtypeStruct((n, n_pad), jnp.float32),
        grid=(pl.cdiv(n, tm),),
        in_specs=[pl.BlockSpec((tm, d0), lambda i: (i, 0))]
                 + [fullspec(a) for a in weights],
        out_specs=pl.BlockSpec((tm, n_pad), lambda i: (i, 0)),
        compiler_params=pltpu.CompilerParams(
            dimension_semantics=("parallel",)),
    )(x_flat, *weights)
    return out[:, :num_classes]


# ------------------------- conv -> dense folding (init) -------------------- #
def conv_to_dense(w, b, h_in, w_in, stride, padding):
    """Fold a PyTorch Conv2d (OIHW weight, NCHW data, zero padding) into a dense
    matrix acting on the (C*H*W)-flattened activation:
        flat_out = flat_in @ M + b_row
    Row order (cin, h, w), column order (cout, ho, wo) == PyTorch NCHW flatten.
    """
    hp = jax.lax.Precision.HIGHEST
    cout, cin, k, _ = w.shape
    h_out = (h_in + 2 * padding - k) // stride + 1
    w_out = (w_in + 2 * padding - k) // stride + 1
    m = jnp.zeros((cin, h_in, w_in, cout, h_out, w_out), jnp.float32)
    rows_h = jnp.arange(h_in)[:, None]
    rows_w = jnp.arange(w_in)[:, None]
    for kh in range(k):
        hi = jnp.arange(h_out) * stride + kh - padding              # (Ho,)
        sel_h = (rows_h == hi[None, :]).astype(jnp.float32)         # (H, Ho)
        for kw in range(k):
            wi = jnp.arange(w_out) * stride + kw - padding          # (Wo,)
            sel_w = (rows_w == wi[None, :]).astype(jnp.float32)     # (W, Wo)
            m = m + jnp.einsum("oc,hp,wq->chwopq",
                               w[:, :, kh, kw], sel_h, sel_w, precision=hp)
    m = m.reshape(cin * h_in * w_in, cout * h_out * w_out)
    b_row = jnp.broadcast_to(b[:, None], (cout, h_out * w_out)).reshape(1, -1)
    return m, b_row, h_out, w_out


def build_dense_params(params, cfg):
    """One-time (weights-only) preprocessing: fold convs to dense matrices,
    pre-transpose fc/out weights, pre-reshape biases. All f32."""
    h, w = cfg["input_shape"]
    mats = []
    for (cw, cb), s in zip(params["convs"], cfg["strides"]):
        m, b_row, h, w = conv_to_dense(cw, cb, h, w, s, cfg["padding"])
        mats.append((m, b_row))
        # TODO(synk): AvgPool2d branch not implemented (use_avgpool=False config).
    (m1, b1), (m2, b2) = mats
    assert m2.shape[1] == cfg["fc_idim"]
    return {
        "m1": m1, "b1": b1, "m2": m2, "b2": b2,
        "wfc": params["fc_w"].T, "bfc": params["fc_b"].reshape(1, -1),
        "wout": params["out_w"].T, "bout": params["out_b"].reshape(1, -1),
    }


def prepare_kernel_params(dense, *, lane=LANE):
    """Cast GEMM operands to bf16 and zero-pad the output layer to a multiple of
    `lane` columns so the final store is lane-dense (unmasked)."""
    bf16 = jnp.bfloat16
    nout = dense["wout"].shape[1]
    pad = (-nout) % lane
    return {
        "m1": dense["m1"].astype(bf16), "b1": dense["b1"],
        "m2": dense["m2"].astype(bf16), "b2": dense["b2"],
        "wfc": dense["wfc"].astype(bf16), "bfc": dense["bfc"],
        "wout": jnp.pad(dense["wout"], ((0, 0), (0, pad))).astype(bf16),
        "bout": jnp.pad(dense["bout"], ((0, 0), (0, pad))),
    }


# --------------------------- references (checks only) ----------------------- #
def reference_forward(x, params, cfg):
    """Pure-JAX f32 reference with exact PyTorch semantics (NCHW, OIHW)."""
    hp = jax.lax.Precision.HIGHEST
    for (w, b), s in zip(params["convs"], cfg["strides"]):
        y = jax.lax.conv_general_dilated(
            x, w, window_strides=(s, s),
            padding=[(cfg["padding"], cfg["padding"])] * 2,
            dimension_numbers=("NCHW", "OIHW", "NCHW"), precision=hp)
        x = jnp.maximum(y + b.reshape(1, -1, 1, 1), 0.0)
    x = x.reshape(x.shape[0], -1)
    h = jnp.maximum(jnp.dot(x, params["fc_w"].T, precision=hp) + params["fc_b"], 0.0)
    return jnp.dot(h, params["out_w"].T, precision=hp) + params["out_b"]


def dense_forward_f32(x, dense):
    """f32 forward through the folded dense matrices (validates the folding)."""
    hp = jax.lax.Precision.HIGHEST
    h = x.reshape(x.shape[0], -1)
    h = jnp.maximum(jnp.dot(h, dense["m1"], precision=hp) + dense["b1"], 0.0)
    h = jnp.maximum(jnp.dot(h, dense["m2"], precision=hp) + dense["b2"], 0.0)
    h = jnp.maximum(jnp.dot(h, dense["wfc"], precision=hp) + dense["bfc"], 0.0)
    return jnp.dot(h, dense["wout"], precision=hp) + dense["bout"]


def dense_forward_bf16(x, kp, num_classes):
    """Emulates the kernel's numerics (bf16 operands, f32 accumulate) in plain
    JAX — tight reference for the Pallas kernel itself."""
    hp, f32 = jax.lax.Precision.HIGHEST, jnp.float32

    def gemm(a, wk, bk):
        return jnp.dot(a.astype(jnp.bfloat16).astype(f32),
                       kp[wk].astype(f32), precision=hp) + kp[bk]

    h = x.reshape(x.shape[0], -1)
    h = jnp.maximum(gemm(h, "m1", "b1"), 0.0)
    h = jnp.maximum(gemm(h, "m2", "b2"), 0.0)
    h = jnp.maximum(gemm(h, "wfc", "bfc"), 0.0)
    return gemm(h, "wout", "bout")[:, :num_classes]


# -------------------------------- param init -------------------------------- #
def _uniform(key, shape, fan_in):
    bound = 1.0 / jnp.sqrt(float(fan_in))
    return jax.random.uniform(key, shape, jnp.float32, -bound, bound)


def init_params(key, cfg):
    nf, k, cin = cfg["num_filters"], cfg["filter_size"], cfg["input_channels"]
    keys = jax.random.split(key, 2 * cfg["num_layers"] + 4)
    convs = []
    in_ch = cin
    for i in range(cfg["num_layers"]):
        fan_in = in_ch * k * k
        w = _uniform(keys[2 * i], (nf, in_ch, k, k), fan_in)
        b = _uniform(keys[2 * i + 1], (nf,), fan_in)
        convs.append((w, b))
        in_ch = nf
    fc_w = _uniform(keys[-4], (cfg["fc_odim"], cfg["fc_idim"]), cfg["fc_idim"])
    fc_b = _uniform(keys[-3], (cfg["fc_odim"],), cfg["fc_idim"])
    out_w = _uniform(keys[-2], (cfg["num_classes"], cfg["fc_odim"]), cfg["fc_odim"])
    out_b = _uniform(keys[-1], (cfg["num_classes"],), cfg["fc_odim"])
    return {"convs": convs, "fc_w": fc_w, "fc_b": fc_b,
            "out_w": out_w, "out_b": out_b}


# ------------------------------------ main ----------------------------------- #
if __name__ == "__main__":
    num_filters, filter_size, num_layers = 4, 3, 2
    input_shape, input_channels = (16, 16), 4
    stride, num_stride2_layers, num_classes = 2, 2, 2
    padding = (filter_size - 1) // 2
    strides = [stride] * num_stride2_layers + [1] * (num_layers - num_stride2_layers)
    sl = min(num_layers, num_stride2_layers)
    fc_idim = int(num_filters * input_shape[0] * input_shape[1] / float(4 ** sl))
    cfg = dict(num_filters=num_filters, filter_size=filter_size,
               num_layers=num_layers, input_channels=input_channels,
               input_shape=input_shape, padding=padding, strides=strides,
               fc_idim=fc_idim, fc_odim=fc_idim, num_classes=num_classes)

    root = jax.random.PRNGKey(0)
    k_params, k_x = jax.random.split(root)
    params = init_params(k_params, cfg)

    dense = build_dense_params(params, cfg)      # one-time weight preprocessing
    kp = prepare_kernel_params(dense)            # bf16 + lane-padded out layer

    batch = 2
    x = jax.random.normal(k_x, (batch, input_channels, *input_shape), jnp.float32)

    fwd = jax.jit(functools.partial(fused_forward, num_classes=num_classes))
    logits = jax.block_until_ready(fwd(x, kp))
    assert logits.shape == (batch, num_classes)

    # (A) conv->dense folding (all-f32) matches the PyTorch-semantics reference.
    ref_true = reference_forward(x, params, cfg)
    ref_fold = dense_forward_f32(x, dense)
    assert jnp.allclose(ref_fold, ref_true, rtol=1e-5, atol=1e-5), (
        f"fold vs ref max abs diff {jnp.max(jnp.abs(ref_fold - ref_true))}")

    # (B) Pallas kernel matches a bf16-operand / f32-accumulate emulation tightly.
    ref_bf16 = dense_forward_bf16(x, kp, num_classes)
    assert jnp.allclose(logits, ref_bf16, rtol=1e-3, atol=1e-4), (
        f"kernel vs bf16 ref max abs diff {jnp.max(jnp.abs(logits - ref_bf16))}")

    # (C) End-to-end sanity vs the pure-f32 reference (bf16-level tolerance).
    assert jnp.allclose(logits, ref_true, rtol=5e-2, atol=5e-2), (
        f"kernel vs f32 ref max abs diff {jnp.max(jnp.abs(logits - ref_true))}")

    print("KERNEL_OK")
</pallas_src>

<mosaic_0001>
module attributes {stable_mosaic.version = 11 : i64} {
  func.func @_fused_forward_kernel(%arg0: i32, %arg1: memref<2x1024xbf16, #tpu.memory_space<vmem>>, %arg2: memref<1024x256xbf16, #tpu.memory_space<vmem>>, %arg3: memref<1x256xf32, #tpu.memory_space<vmem>>, %arg4: memref<256x64xbf16, #tpu.memory_space<vmem>>, %arg5: memref<1x64xf32, #tpu.memory_space<vmem>>, %arg6: memref<64x64xbf16, #tpu.memory_space<vmem>>, %arg7: memref<1x64xf32, #tpu.memory_space<vmem>>, %arg8: memref<64x128xbf16, #tpu.memory_space<vmem>>, %arg9: memref<1x128xf32, #tpu.memory_space<vmem>>, %arg10: memref<2x128xf32, #tpu.memory_space<vmem>>) attributes {dimension_semantics = [#tpu.dimension_semantics<parallel>], iteration_bounds = array<i64: 1>, scalar_prefetch = 0 : i64, scratch_operands = 0 : i64, tpu.core_type = #tpu.core_type<tc>, window_params = [{transform_indices = @transform_0, window_bounds = array<i64: 2, 1024>}, {pipeline_mode = #tpu.pipeline_mode<synchronous>, transform_indices = @transform_1, window_bounds = array<i64: 1024, 256>}, {pipeline_mode = #tpu.pipeline_mode<synchronous>, transform_indices = @transform_2, window_bounds = array<i64: 1, 256>}, {pipeline_mode = #tpu.pipeline_mode<synchronous>, transform_indices = @transform_3, window_bounds = array<i64: 256, 64>}, {pipeline_mode = #tpu.pipeline_mode<synchronous>, transform_indices = @transform_4, window_bounds = array<i64: 1, 64>}, {pipeline_mode = #tpu.pipeline_mode<synchronous>, transform_indices = @transform_5, window_bounds = array<i64: 64, 64>}, {pipeline_mode = #tpu.pipeline_mode<synchronous>, transform_indices = @transform_6, window_bounds = array<i64: 1, 64>}, {pipeline_mode = #tpu.pipeline_mode<synchronous>, transform_indices = @transform_7, window_bounds = array<i64: 64, 128>}, {pipeline_mode = #tpu.pipeline_mode<synchronous>, transform_indices = @transform_8, window_bounds = array<i64: 1, 128>}, {transform_indices = @transform_9, window_bounds = array<i64: 2, 128>}]} {
    %c0 = arith.constant 0 : index
    %c0_0 = arith.constant 0 : index
    %0 = vector.load %arg1[%c0, %c0_0] : memref<2x1024xbf16, #tpu.memory_space<vmem>>, vector<2x1024xbf16>
    %c0_1 = arith.constant 0 : index
    %c0_2 = arith.constant 0 : index
    %1 = vector.load %arg2[%c0_1, %c0_2] : memref<1024x256xbf16, #tpu.memory_space<vmem>>, vector<1024x256xbf16>
    %cst = arith.constant dense<0.000000e+00> : vector<2x256xf32>
    %2 = tpu.matmul %0, %1, %cst {dimension_numbers = #tpu.dot_dimension_numbers<[1], [0], [0], [1], [0, 0, 1, 1], [], []>} : vector<2x1024xbf16>, vector<1024x256xbf16>, vector<2x256xf32> -> vector<2x256xf32>
    %c0_3 = arith.constant 0 : index
    %c0_4 = arith.constant 0 : index
    %3 = vector.load %arg3[%c0_3, %c0_4] : memref<1x256xf32, #tpu.memory_space<vmem>>, vector<1x256xf32>
    %4 = vector.broadcast %3 : vector<1x256xf32> to vector<2x256xf32>
    %5 = arith.addf %2, %4 : vector<2x256xf32>
    %cst_5 = arith.constant 0.000000e+00 : f32
    %6 = vector.broadcast %cst_5 : f32 to vector<2x256xf32>
    %7 = arith.maximumf %5, %6 : vector<2x256xf32>
    %8 = arith.truncf %7 : vector<2x256xf32> to vector<2x256xbf16>
    %c0_6 = arith.constant 0 : index
    %c0_7 = arith.constant 0 : index
    %9 = vector.load %arg4[%c0_6, %c0_7] : memref<256x64xbf16, #tpu.memory_space<vmem>>, vector<256x64xbf16>
    %cst_8 = arith.constant dense<0.000000e+00> : vector<2x64xf32>
    %10 = tpu.matmul %8, %9, %cst_8 {dimension_numbers = #tpu.dot_dimension_numbers<[1], [0], [0], [1], [0, 0, 1, 1], [], []>} : vector<2x256xbf16>, vector<256x64xbf16>, vector<2x64xf32> -> vector<2x64xf32>
    %c0_9 = arith.constant 0 : index
    %c0_10 = arith.constant 0 : index
    %11 = vector.load %arg5[%c0_9, %c0_10] : memref<1x64xf32, #tpu.memory_space<vmem>>, vector<1x64xf32>
    %12 = vector.broadcast %11 : vector<1x64xf32> to vector<2x64xf32>
    %13 = arith.addf %10, %12 : vector<2x64xf32>
    %cst_11 = arith.constant 0.000000e+00 : f32
    %14 = vector.broadcast %cst_11 : f32 to vector<2x64xf32>
    %15 = arith.maximumf %13, %14 : vector<2x64xf32>
    %16 = arith.truncf %15 : vector<2x64xf32> to vector<2x64xbf16>
    %c0_12 = arith.constant 0 : index
    %c0_13 = arith.constant 0 : index
    %17 = vector.load %arg6[%c0_12, %c0_13] : memref<64x64xbf16, #tpu.memory_space<vmem>>, vector<64x64xbf16>
    %cst_14 = arith.constant dense<0.000000e+00> : vector<2x64xf32>
    %18 = tpu.matmul %16, %17, %cst_14 {dimension_numbers = #tpu.dot_dimension_numbers<[1], [0], [0], [1], [0, 0, 1, 1], [], []>} : vector<2x64xbf16>, vector<64x64xbf16>, vector<2x64xf32> -> vector<2x64xf32>
    %c0_15 = arith.constant 0 : index
    %c0_16 = arith.constant 0 : index
    %19 = vector.load %arg7[%c0_15, %c0_16] : memref<1x64xf32, #tpu.memory_space<vmem>>, vector<1x64xf32>
    %20 = vector.broadcast %19 : vector<1x64xf32> to vector<2x64xf32>
    %21 = arith.addf %18, %20 : vector<2x64xf32>
    %cst_17 = arith.constant 0.000000e+00 : f32
    %22 = vector.broadcast %cst_17 : f32 to vector<2x64xf32>
    %23 = arith.maximumf %21, %22 : vector<2x64xf32>
    %24 = arith.truncf %23 : vector<2x64xf32> to vector<2x64xbf16>
    %c0_18 = arith.constant 0 : index
    %c0_19 = arith.constant 0 : index
    %25 = vector.load %arg8[%c0_18, %c0_19] : memref<64x128xbf16, #tpu.memory_space<vmem>>, vector<64x128xbf16>
    %cst_20 = arith.constant dense<0.000000e+00> : vector<2x128xf32>
    %26 = tpu.matmul %24, %25, %cst_20 {dimension_numbers = #tpu.dot_dimension_numbers<[1], [0], [0], [1], [0, 0, 1, 1], [], []>} : vector<2x64xbf16>, vector<64x128xbf16>, vector<2x128xf32> -> vector<2x128xf32>
    %c0_21 = arith.constant 0 : index
    %c0_22 = arith.constant 0 : index
    %27 = vector.load %arg9[%c0_21, %c0_22] : memref<1x128xf32, #tpu.memory_space<vmem>>, vector<1x128xf32>
    %28 = vector.broadcast %27 : vector<1x128xf32> to vector<2x128xf32>
    %29 = arith.addf %26, %28 : vector<2x128xf32>
    %c0_23 = arith.constant 0 : index
    %c0_24 = arith.constant 0 : index
    %30 = vector.load %arg10[%c0_23, %c0_24] : memref<2x128xf32, #tpu.memory_space<vmem>>, vector<2x128xf32>
    tpu.vector_store %arg10[%c0_23, %c0_24], %29 {strides = array<i32>} : memref<2x128xf32, #tpu.memory_space<vmem>>, vector<2x128xf32>,
    return
  }
  func.func @transform_0(%arg0: i32) -> (i32, i32) {
    %c0_i32 = arith.constant 0 : i32
    %c0_i32_0 = arith.constant 0 : i32
    return %arg0, %c0_i32 : i32, i32
  }
  func.func @transform_1(%arg0: i32) -> (i32, i32) {
    %c0_i32 = arith.constant 0 : i32
    %c0_i32_0 = arith.constant 0 : i32
    %c0_i32_1 = arith.constant 0 : i32
    return %c0_i32, %c0_i32_0 : i32, i32
  }
  func.func @transform_2(%arg0: i32) -> (i32, i32) {
    %c0_i32 = arith.constant 0 : i32
    %c0_i32_0 = arith.constant 0 : i32
    %c0_i32_1 = arith.constant 0 : i32
    return %c0_i32, %c0_i32_0 : i32, i32
  }
  func.func @transform_3(%arg0: i32) -> (i32, i32) {
    %c0_i32 = arith.constant 0 : i32
    %c0_i32_0 = arith.constant 0 : i32
    %c0_i32_1 = arith.constant 0 : i32
    return %c0_i32, %c0_i32_0 : i32, i32
  }
  func.func @transform_4(%arg0: i32) -> (i32, i32) {
    %c0_i32 = arith.constant 0 : i32
    %c0_i32_0 = arith.constant 0 : i32
    %c0_i32_1 = arith.constant 0 : i32
    return %c0_i32, %c0_i32_0 : i32, i32
  }
  func.func @transform_5(%arg0: i32) -> (i32, i32) {
    %c0_i32 = arith.constant 0 : i32
    %c0_i32_0 = arith.constant 0 : i32
    %c0_i32_1 = arith.constant 0 : i32
    return %c0_i32, %c0_i32_0 : i32, i32
  }
  func.func @transform_6(%arg0: i32) -> (i32, i32) {
    %c0_i32 = arith.constant 0 : i32
    %c0_i32_0 = arith.constant 0 : i32
    %c0_i32_1 = arith.constant 0 : i32
    return %c0_i32, %c0_i32_0 : i32, i32
  }
  func.func @transform_7(%arg0: i32) -> (i32, i32) {
    %c0_i32 = arith.constant 0 : i32
    %c0_i32_0 = arith.constant 0 : i32
    %c0_i32_1 = arith.constant 0 : i32
    return %c0_i32, %c0_i32_0 : i32, i32
  }
  func.func @transform_8(%arg0: i32) -> (i32, i32) {
    %c0_i32 = arith.constant 0 : i32
    %c0_i32_0 = arith.constant 0 : i32
    %c0_i32_1 = arith.constant 0 : i32
    return %c0_i32, %c0_i32_0 : i32, i32
  }
  func.func @transform_9(%arg0: i32) -> (i32, i32) {
    %c0_i32 = arith.constant 0 : i32
    %c0_i32_0 = arith.constant 0 : i32
    return %arg0, %c0_i32 : i32, i32
  }
}

</mosaic_0001>

<llo_original>
// kernel: fused_forward.1
$region0: #{fused_forward.1}
  #allocation0 [shape = 'u32[]', space=smem, size = 0x4, offset = 0x4, fixed_abs, tag = 'smem constant byte address 0x4 - core index']
  #allocation1 [shape = 'u32[144,128]{1,0:T(1,128)}', space=vmem, size = 0x12000, scoped, tag = 'internal scratch']
  %s0 = inlined_call_operand.vmem [shape: bf16[2,1024], index: 0, kind: input, shape index: {}]
  %s1 = inlined_call_operand.hbm [shape: bf16[1024,256], index: 1, kind: input, shape index: {}]
  %s2 = inlined_call_operand.vmem [shape: f32[1,256], index: 2, kind: input, shape index: {}]
  %s3 = inlined_call_operand.vmem [shape: bf16[256,64], index: 3, kind: input, shape index: {}]
  %s4 = inlined_call_operand.vmem [shape: f32[1,64], index: 4, kind: input, shape index: {}]
  %s5 = inlined_call_operand.vmem [shape: bf16[64,64], index: 5, kind: input, shape index: {}]
  %s6 = inlined_call_operand.vmem [shape: f32[1,64], index: 6, kind: input, shape index: {}]
  %s7 = inlined_call_operand.vmem [shape: bf16[64,128], index: 7, kind: input, shape index: {}]
  %s8 = inlined_call_operand.vmem [shape: f32[1,128], index: 8, kind: input, shape index: {}]
  %s9 = inlined_call_operand.hbm [shape: f32[2,128], index: 9, kind: output, shape index: {}]
  %s10 = sld [smem:[#allocation0]]
  $region50: #{fused_forward.1} parent=0
    _
  %s12 = ssub.s32 1, %s10
  %s13 = scalar_select 0, %s12, %s10
  $region1: #{fused_forward.1} parent=0
    #allocation2 [shape = 'u8[524288]{0}', space=vmem, size = 0x80000, scoped, tag = 'input window, operand 1, single buffered']
    #allocation3 [shape = 's32[1]{0}', space=sflag, size = 0x4, scoped, tag = 'scoped memory for fused_forward.1']
    #allocation4 [shape = 's32[1]{0}', space=sflag, size = 0x4, scoped, tag = 'scoped memory for fused_forward.1']
    #allocation5 [shape = 'u8[1024]{0}', space=vmem, size = 0x400, scoped, tag = 'output window, operand 0, single buffered']
    %14 = vsyncpa [#allocation3], 0
    %15 = vsyncpa [#allocation4], 0
    // Predicated region
    $region2: #{fused_forward.1} parent=1 // pred_check
      _
    $region3: #{fused_forward.1} parent=1 // pred_check_branch
      %17 = sbr.rel (0) target = $region5
    $region4: #{fused_forward.1} parent=1 // pred_region
      _
    $region5: #{fused_forward.1} parent=1 // pred_fallthru
      _
    // Predicated region
    $region6: #{fused_forward.1} parent=1 // pred_check
      _
    $region7: #{fused_forward.1} parent=1 // pred_check_branch
      %19 = sbr.rel (0) target = $region9
    $region8: #{fused_forward.1} parent=1 // pred_region
      %s21 = ssub.s32 16384, 16384
      %22 = vsyncadd [#allocation3], %s21
      %s23 = sshll.u32 [#allocation2], 4
      %s24 = int_to_ptr.vmem [resolvable:$true] %s23
      %29 = dma.hbm_to_vmem [thread:$0]  %s1, 16384, %s24, [#allocation3], 128, 128, 8
    $region9: #{fused_forward.1} parent=1 // pred_fallthru
      _
    // Predicated region
    $region10: #{fused_forward.1} parent=1 // pred_check
      _
    $region11: #{fused_forward.1} parent=1 // pred_check_branch
      %31 = sbr.rel (0) target = $region13
    $region12: #{fused_forward.1} parent=1 // pred_region
      _
    $region13: #{fused_forward.1} parent=1 // pred_fallthru
      _
    // Predicated region
    $region14: #{fused_forward.1} parent=1 // pred_check
      _
    $region15: #{fused_forward.1} parent=1 // pred_check_branch
      %33 = sbr.rel (0) target = $region17
    $region16: #{fused_forward.1} parent=1 // pred_region
      _
    $region17: #{fused_forward.1} parent=1 // pred_fallthru
      _
    // Predicated region
    $region18: #{fused_forward.1} parent=1 // pred_check
      _
    $region19: #{fused_forward.1} parent=1 // pred_check_branch
      %35 = sbr.rel (0) target = $region21
    $region20: #{fused_forward.1} parent=1 // pred_region
      _
    $region21: #{fused_forward.1} parent=1 // pred_fallthru
      _
    // Predicated region
    $region22: #{fused_forward.1} parent=1 // pred_check
      _
    $region23: #{fused_forward.1} parent=1 // pred_check_branch
      %37 = sbr.rel (0) target = $region25
    $region24: #{fused_forward.1} parent=1 // pred_region
      _
    $region25: #{fused_forward.1} parent=1 // pred_fallthru
      _
    // Predicated region
    $region26: #{fused_forward.1} parent=1 // pred_check
      _
    $region27: #{fused_forward.1} parent=1 // pred_check_branch
      %39 = sbr.rel (0) target = $region29
    $region28: #{fused_forward.1} parent=1 // pred_region
      _
    $region29: #{fused_forward.1} parent=1 // pred_fallthru
      _
    // Predicated region
    $region30: #{fused_forward.1} parent=1 // pred_check
      _
    $region31: #{fused_forward.1} parent=1 // pred_check_branch
      %41 = sbr.rel (0) target = $region33
    $region32: #{fused_forward.1} parent=1 // pred_region
      _
    $region33: #{fused_forward.1} parent=1 // pred_fallthru
      _
    // Predicated region
    $region34: #{fused_forward.1} parent=1 // pred_check
      _
    $region35: #{fused_forward.1} parent=1 // pred_check_branch
      %43 = sbr.rel (0) target = $region37
    $region36: #{fused_forward.1} parent=1 // pred_region
      _
    $region37: #{fused_forward.1} parent=1 // pred_fallthru
      _
    // Predicated region
    $region38: #{fused_forward.1} parent=1 // pred_check
      _
    $region39: #{fused_forward.1} parent=1 // pred_check_branch
      %45 = sbr.rel (0) target = $region41
    $region40: #{fused_forward.1} parent=1 // pred_region
      %46 = dma.done [#allocation3], 16384
    $region41: #{fused_forward.1} parent=1 // pred_fallthru
      _
    %v48 = vld [vmem:[%s0] sm:$0xff]
    %v49 = vld [vmem:[#allocation2] sm:$0xff]
    %v50 = vld [vmem:[#allocation2 + $0x8] sm:$0xff]
    %v51 = vld [vmem:[#allocation2 + $0x10] sm:$0xff]
    %v52 = vld [vmem:[#allocation2 + $0x18] sm:$0xff]
    %v53 = vld [vmem:[#allocation2 + $0x20] sm:$0xff]
    %v54 = vld [vmem:[#allocation2 + $0x28] sm:$0xff]
    %v55 = vld [vmem:[#allocation2 + $0x30] sm:$0xff]
    %v56 = vld [vmem:[#allocation2 + $0x38] sm:$0xff]
    %v57 = vld [vmem:[#allocation2 + $0x40] sm:$0xff]
    %v58 = vld [vmem:[#allocation2 + $0x48] sm:$0xff]
    %v59 = vld [vmem:[#allocation2 + $0x50] sm:$0xff]
    %v60 = vld [vmem:[#allocation2 + $0x58] sm:$0xff]
    %v61 = vld [vmem:[#allocation2 + $0x60] sm:$0xff]
    %v62 = vld [vmem:[#allocation2 + $0x68] sm:$0xff]
    %v63 = vld [vmem:[#allocation2 + $0x70] sm:$0xff]
    %v64 = vld [vmem:[#allocation2 + $0x78] sm:$0xff]
    %v65 = vld [vmem:[#allocation2 + $0x80] sm:$0xff]
    %v66 = vld [vmem:[#allocation2 + $0x88] sm:$0xff]
    %v67 = vld [vmem:[#allocation2 + $0x90] sm:$0xff]
    %v68 = vld [vmem:[#allocation2 + $0x98] sm:$0xff]
    %v69 = vld [vmem:[#allocation2 + $0xa0] sm:$0xff]
    %v70 = vld [vmem:[#allocation2 + $0xa8] sm:$0xff]
    %v71 = vld [vmem:[#allocation2 + $0xb0] sm:$0xff]
    %v72 = vld [vmem:[#allocation2 + $0xb8] sm:$0xff]
    %v73 = vld [vmem:[#allocation2 + $0xc0] sm:$0xff]
    %v74 = vld [vmem:[#allocation2 + $0xc8] sm:$0xff]
    %v75 = vld [vmem:[#allocation2 + $0xd0] sm:$0xff]
    %v76 = vld [vmem:[#allocation2 + $0xd8] sm:$0xff]
    %v77 = vld [vmem:[#allocation2 + $0xe0] sm:$0xff]
    %v78 = vld [vmem:[#allocation2 + $0xe8] sm:$0xff]
    %v79 = vld [vmem:[#allocation2 + $0xf0] sm:$0xff]
    %v80 = vld [vmem:[#allocation2 + $0xf8] sm:$0xff]
    %v81 = vld [vmem:[#allocation2 + $0x100] sm:$0xff]
    %v82 = vld [vmem:[#allocation2 + $0x108] sm:$0xff]
    %v83 = vld [vmem:[#allocation2 + $0x110] sm:$0xff]
    %v84 = vld [vmem:[#allocation2 + $0x118] sm:$0xff]
    %v85 = vld [vmem:[#allocation2 + $0x120] sm:$0xff]
    %v86 = vld [vmem:[#allocation2 + $0x128] sm:$0xff]
    %v87 = vld [vmem:[#allocation2 + $0x130] sm:$0xff]
    %v88 = vld [vmem:[#allocation2 + $0x138] sm:$0xff]
    %v89 = vld [vmem:[#allocation2 + $0x140] sm:$0xff]
    %v90 = vld [vmem:[#allocation2 + $0x148] sm:$0xff]
    %v91 = vld [vmem:[#allocation2 + $0x150] sm:$0xff]
    %v92 = vld [vmem:[#allocation2 + $0x158] sm:$0xff]
    %v93 = vld [vmem:[#allocation2 + $0x160] sm:$0xff]
    %v94 = vld [vmem:[#allocation2 + $0x168] sm:$0xff]
    %v95 = vld [vmem:[#allocation2 + $0x170] sm:$0xff]
    %v96 = vld [vmem:[#allocation2 + $0x178] sm:$0xff]
    %v97 = vld [vmem:[#allocation2 + $0x180] sm:$0xff]
    %v98 = vld [vmem:[#allocation2 + $0x188] sm:$0xff]
    %v99 = vld [vmem:[#allocation2 + $0x190] sm:$0xff]
    %v100 = vld [vmem:[#allocation2 + $0x198] sm:$0xff]
    %v101 = vld [vmem:[#allocation2 + $0x1a0] sm:$0xff]
    %v102 = vld [vmem:[#allocation2 + $0x1a8] sm:$0xff]
    %v103 = vld [vmem:[#allocation2 + $0x1b0] sm:$0xff]
    %v104 = vld [vmem:[#allocation2 + $0x1b8] sm:$0xff]
    %v105 = vld [vmem:[#allocation2 + $0x1c0] sm:$0xff]
    %v106 = vld [vmem:[#allocation2 + $0x1c8] sm:$0xff]
    %v107 = vld [vmem:[#allocation2 + $0x1d0] sm:$0xff]
    %v108 = vld [vmem:[#allocation2 + $0x1d8] sm:$0xff]
    %v109 = vld [vmem:[#allocation2 + $0x1e0] sm:$0xff]
    %v110 = vld [vmem:[#allocation2 + $0x1e8] sm:$0xff]
    %v111 = vld [vmem:[#allocation2 + $0x1f0] sm:$0xff]
    %v112 = vld [vmem:[#allocation2 + $0x1f8] sm:$0xff]
    %v113 = vld [vmem:[#allocation2 + $0x200] sm:$0xff]
    %v114 = vld [vmem:[#allocation2 + $0x208] sm:$0xff]
    %v115 = vld [vmem:[#allocation2 + $0x210] sm:$0xff]
    %v116 = vld [vmem:[#allocation2 + $0x218] sm:$0xff]
    %v117 = vld [vmem:[#allocation2 + $0x220] sm:$0xff]
    %v118 = vld [vmem:[#allocation2 + $0x228] sm:$0xff]
    %v119 = vld [vmem:[#allocation2 + $0x230] sm:$0xff]
    %v120 = vld [vmem:[#allocation2 + $0x238] sm:$0xff]
    %v121 = vld [vmem:[#allocation2 + $0x240] sm:$0xff]
    %v122 = vld [vmem:[#allocation2 + $0x248] sm:$0xff]
    %v123 = vld [vmem:[#allocation2 + $0x250] sm:$0xff]
    %v124 = vld [vmem:[#allocation2 + $0x258] sm:$0xff]
    %v125 = vld [vmem:[#allocation2 + $0x260] sm:$0xff]
    %v126 = vld [vmem:[#allocation2 + $0x268] sm:$0xff]
    %v127 = vld [vmem:[#allocation2 + $0x270] sm:$0xff]
    %v128 = vld [vmem:[#allocation2 + $0x278] sm:$0xff]
    %v129 = vld [vmem:[#allocation2 + $0x280] sm:$0xff]
    %v130 = vld [vmem:[#allocation2 + $0x288] sm:$0xff]
    %v131 = vld [vmem:[#allocation2 + $0x290] sm:$0xff]
    %v132 = vld [vmem:[#allocation2 + $0x298] sm:$0xff]
    %v133 = vld [vmem:[#allocation2 + $0x2a0] sm:$0xff]
    %v134 = vld [vmem:[#allocation2 + $0x2a8] sm:$0xff]
    %v135 = vld [vmem:[#allocation2 + $0x2b0] sm:$0xff]
    %v136 = vld [vmem:[#allocation2 + $0x2b8] sm:$0xff]
    %v137 = vld [vmem:[#allocation2 + $0x2c0] sm:$0xff]
    %v138 = vld [vmem:[#allocation2 + $0x2c8] sm:$0xff]
    %v139 = vld [vmem:[#allocation2 + $0x2d0] sm:$0xff]
    %v140 = vld [vmem:[#allocation2 + $0x2d8] sm:$0xff]
    %v141 = vld [vmem:[#allocation2 + $0x2e0] sm:$0xff]
    %v142 = vld [vmem:[#allocation2 + $0x2e8] sm:$0xff]
    %v143 = vld [vmem:[#allocation2 + $0x2f0] sm:$0xff]
    %v144 = vld [vmem:[#allocation2 + $0x2f8] sm:$0xff]
    %v145 = vld [vmem:[#allocation2 + $0x300] sm:$0xff]
    %v146 = vld [vmem:[#allocation2 + $0x308] sm:$0xff]
    %v147 = vld [vmem:[#allocation2 + $0x310] sm:$0xff]
    %v148 = vld [vmem:[#allocation2 + $0x318] sm:$0xff]
    %v149 = vld [vmem:[#allocation2 + $0x320] sm:$0xff]
    %v150 = vld [vmem:[#allocation2 + $0x328] sm:$0xff]
    %v151 = vld [vmem:[#allocation2 + $0x330] sm:$0xff]
    %v152 = vld [vmem:[#allocation2 + $0x338] sm:$0xff]
    %v153 = vld [vmem:[#allocation2 + $0x340] sm:$0xff]
    %v154 = vld [vmem:[#allocation2 + $0x348] sm:$0xff]
    %v155 = vld [vmem:[#allocation2 + $0x350] sm:$0xff]
    %v156 = vld [vmem:[#allocation2 + $0x358] sm:$0xff]
    %v157 = vld [vmem:[#allocation2 + $0x360] sm:$0xff]
    %v158 = vld [vmem:[#allocation2 + $0x368] sm:$0xff]
    %v159 = vld [vmem:[#allocation2 + $0x370] sm:$0xff]
    %v160 = vld [vmem:[#allocation2 + $0x378] sm:$0xff]
    %v161 = vld [vmem:[#allocation2 + $0x380] sm:$0xff]
    %v162 = vld [vmem:[#allocation2 + $0x388] sm:$0xff]
    %v163 = vld [vmem:[#allocation2 + $0x390] sm:$0xff]
    %v164 = vld [vmem:[#allocation2 + $0x398] sm:$0xff]
    %v165 = vld [vmem:[#allocation2 + $0x3a0] sm:$0xff]
    %v166 = vld [vmem:[#allocation2 + $0x3a8] sm:$0xff]
    %v167 = vld [vmem:[#allocation2 + $0x3b0] sm:$0xff]
    %v168 = vld [vmem:[#allocation2 + $0x3b8] sm:$0xff]
    %v169 = vld [vmem:[#allocation2 + $0x3c0] sm:$0xff]
    %v170 = vld [vmem:[#allocation2 + $0x3c8] sm:$0xff]
    %v171 = vld [vmem:[#allocation2 + $0x3d0] sm:$0xff]
    %v172 = vld [vmem:[#allocation2 + $0x3d8] sm:$0xff]
    %v173 = vld [vmem:[#allocation2 + $0x3e0] sm:$0xff]
    %v174 = vld [vmem:[#allocation2 + $0x3e8] sm:$0xff]
    %v175 = vld [vmem:[#allocation2 + $0x3f0] sm:$0xff]
    %v176 = vld [vmem:[#allocation2 + $0x3f8] sm:$0xff]
    %v177 = vld [vmem:[%s2] sm:$0x3]
    %v179 = vlaneseq
    %v180 = vshrl.u32 %v179, 7
    %v181 = vsub.s32 0, %v180
    %v182 = vrot.slane %v177, %v181
    %v183 = vlaneseq
    %v184 = vshrl.u32 %v183, 7
    %v185 = vsub.s32 1, %v184
    %v186 = vrot.slane %v177, %v185
    %v190 = vcombine.high %v48, %v48
    %v192 = vunpack.c.l.s4 1966171168
    %v193 = vunpack.c.0.s8 %v192
    %v194 = vlaneseq
    %v195 = vshrl.u32 %v194, 7
    %v196 = vsub.s32 %v193, %v195
    %v197 = vrot.slane %v48, %v196
    %v199 = vunpack.c.l.s4 1966171168
    %v200 = vunpack.c.0.s8 %v199
    %v201 = vlaneseq
    %v202 = vshrl.u32 %v201, 7
    %v203 = vsub.s32 %v200, %v202
    %v204 = vrot.slane %v190, %v203
    %v205 = vcombine.high %v197, %v197
    %v206 = vcombine.high %v204, %v204
    %v208 = vunpack.c.l.s4 1966171168
    %v209 = vunpack.c.0.s8 %v208
    %v210 = vlaneseq
    %v211 = vshrl.u32 %v210, 7
    %v212 = vsub.s32 %v209, %v211
    %v213 = vrot.slane %v197, %v212
    %v215 = vunpack.c.l.s4 1966171168
    %v216 = vunpack.c.0.s8 %v215
    %v217 = vlaneseq
    %v218 = vshrl.u32 %v217, 7
    %v219 = vsub.s32 %v216, %v218
    %v220 = vrot.slane %v204, %v219
    %v222 = vunpack.c.l.s4 1966171168
    %v223 = vunpack.c.0.s8 %v222
    %v224 = vlaneseq
    %v225 = vshrl.u32 %v224, 7
    %v226 = vsub.s32 %v223, %v225
    %v227 = vrot.slane %v205, %v226
    %v229 = vunpack.c.l.s4 1966171168
    %v230 = vunpack.c.0.s8 %v229
    %v231 = vlaneseq
    %v232 = vshrl.u32 %v231, 7
    %v233 = vsub.s32 %v230, %v232
    %v234 = vrot.slane %v206, %v233
    %v235 = vcombine.high %v213, %v213
    %v236 = vcombine.high %v220, %v220
    %v237 = vcombine.high %v227, %v227
    %v238 = vcombine.high %v234, %v234
    %v375 = vunpack.c.l.b16 %v49
    %v376 = vunpack.c.h.b16 %v49
    %v377 = vunpack.c.l.b16 %v50
    %v378 = vunpack.c.h.b16 %v50
    %v379 = vunpack.c.l.b16 %v51
    %v380 = vunpack.c.h.b16 %v51
    %v381 = vunpack.c.l.b16 %v52
    %v382 = vunpack.c.h.b16 %v52
    %v383 = vunpack.c.l.b16 %v53
    %v384 = vunpack.c.h.b16 %v53
    %v385 = vunpack.c.l.b16 %v54
    %v386 = vunpack.c.h.b16 %v54
    %v387 = vunpack.c.l.b16 %v55
    %v388 = vunpack.c.h.b16 %v55
    %v389 = vunpack.c.l.b16 %v56
    %v390 = vunpack.c.h.b16 %v56
    %v391 = vunpack.c.l.b16 %v57
    %v392 = vunpack.c.h.b16 %v57
    %v393 = vunpack.c.l.b16 %v58
    %v394 = vunpack.c.h.b16 %v58
    %v395 = vunpack.c.l.b16 %v59
    %v396 = vunpack.c.h.b16 %v59
    %v397 = vunpack.c.l.b16 %v60
    %v398 = vunpack.c.h.b16 %v60
    %v399 = vunpack.c.l.b16 %v61
    %v400 = vunpack.c.h.b16 %v61
    %v401 = vunpack.c.l.b16 %v62
    %v402 = vunpack.c.h.b16 %v62
    %v403 = vunpack.c.l.b16 %v63
    %v404 = vunpack.c.h.b16 %v63
    %v405 = vunpack.c.l.b16 %v64
    %v406 = vunpack.c.h.b16 %v64
    %v407 = vunpack.c.l.b16 %v65
    %v408 = vunpack.c.h.b16 %v65
    %v409 = vunpack.c.l.b16 %v66
    %v410 = vunpack.c.h.b16 %v66
    %v411 = vunpack.c.l.b16 %v67
    %v412 = vunpack.c.h.b16 %v67
    %v413 = vunpack.c.l.b16 %v68
    %v414 = vunpack.c.h.b16 %v68
    %v415 = vunpack.c.l.b16 %v69
    %v416 = vunpack.c.h.b16 %v69
    %v417 = vunpack.c.l.b16 %v70
    %v418 = vunpack.c.h.b16 %v70
    %v419 = vunpack.c.l.b16 %v71
    %v420 = vunpack.c.h.b16 %v71
    %v421 = vunpack.c.l.b16 %v72
    %v422 = vunpack.c.h.b16 %v72
    %v423 = vunpack.c.l.b16 %v73
    %v424 = vunpack.c.h.b16 %v73
    %v425 = vunpack.c.l.b16 %v74
    %v426 = vunpack.c.h.b16 %v74
    %v427 = vunpack.c.l.b16 %v75
    %v428 = vunpack.c.h.b16 %v75
    %v429 = vunpack.c.l.b16 %v76
    %v430 = vunpack.c.h.b16 %v76
    %v431 = vunpack.c.l.b16 %v77
    %v432 = vunpack.c.h.b16 %v77
    %v433 = vunpack.c.l.b16 %v78
    %v434 = vunpack.c.h.b16 %v78
    %v435 = vunpack.c.l.b16 %v79
    %v436 = vunpack.c.h.b16 %v79
    %v437 = vunpack.c.l.b16 %v80
    %v438 = vunpack.c.h.b16 %v80
    %v439 = vunpack.c.l.b16 %v81
    %v440 = vunpack.c.h.b16 %v81
    %v441 = vunpack.c.l.b16 %v82
    %v442 = vunpack.c.h.b16 %v82
    %v443 = vunpack.c.l.b16 %v83
    %v444 = vunpack.c.h.b16 %v83
    %v445 = vunpack.c.l.b16 %v84
    %v446 = vunpack.c.h.b16 %v84
    %v447 = vunpack.c.l.b16 %v85
    %v448 = vunpack.c.h.b16 %v85
    %v449 = vunpack.c.l.b16 %v86
    %v450 = vunpack.c.h.b16 %v86
    %v451 = vunpack.c.l.b16 %v87
    %v452 = vunpack.c.h.b16 %v87
    %v453 = vunpack.c.l.b16 %v88
    %v454 = vunpack.c.h.b16 %v88
    %v455 = vunpack.c.l.b16 %v89
    %v456 = vunpack.c.h.b16 %v89
    %v457 = vunpack.c.l.b16 %v90
    %v458 = vunpack.c.h.b16 %v90
    %v459 = vunpack.c.l.b16 %v91
    %v460 = vunpack.c.h.b16 %v91
    %v461 = vunpack.c.l.b16 %v92
    %v462 = vunpack.c.h.b16 %v92
    %v463 = vunpack.c.l.b16 %v93
    %v464 = vunpack.c.h.b16 %v93
    %v465 = vunpack.c.l.b16 %v94
    %v466 = vunpack.c.h.b16 %v94
    %v467 = vunpack.c.l.b16 %v95
    %v468 = vunpack.c.h.b16 %v95
    %v469 = vunpack.c.l.b16 %v96
    %v470 = vunpack.c.h.b16 %v96
    %v471 = vunpack.c.l.b16 %v97
    %v472 = vunpack.c.h.b16 %v97
    %v473 = vunpack.c.l.b16 %v98
    %v474 = vunpack.c.h.b16 %v98
    %v475 = vunpack.c.l.b16 %v99
    %v476 = vunpack.c.h.b16 %v99
    %v477 = vunpack.c.l.b16 %v100
    %v478 = vunpack.c.h.b16 %v100
    %v479 = vunpack.c.l.b16 %v101
    %v480 = vunpack.c.h.b16 %v101
    %v481 = vunpack.c.l.b16 %v102
    %v482 = vunpack.c.h.b16 %v102
    %v483 = vunpack.c.l.b16 %v103
    %v484 = vunpack.c.h.b16 %v103
    %v485 = vunpack.c.l.b16 %v104
    %v486 = vunpack.c.h.b16 %v104
    %v487 = vunpack.c.l.b16 %v105
    %v488 = vunpack.c.h.b16 %v105
    %v489 = vunpack.c.l.b16 %v106
    %v490 = vunpack.c.h.b16 %v106
    %v491 = vunpack.c.l.b16 %v107
    %v492 = vunpack.c.h.b16 %v107
    %v493 = vunpack.c.l.b16 %v108
    %v494 = vunpack.c.h.b16 %v108
    %v495 = vunpack.c.l.b16 %v109
    %v496 = vunpack.c.h.b16 %v109
    %v497 = vunpack.c.l.b16 %v110
    %v498 = vunpack.c.h.b16 %v110
    %v499 = vunpack.c.l.b16 %v111
    %v500 = vunpack.c.h.b16 %v111
    %v501 = vunpack.c.l.b16 %v112
    %v502 = vunpack.c.h.b16 %v112
    %v503 = vunpack.c.l.b16 %v113
    %v504 = vunpack.c.h.b16 %v113
    %v505 = vunpack.c.l.b16 %v114
    %v506 = vunpack.c.h.b16 %v114
    %v507 = vunpack.c.l.b16 %v115
    %v508 = vunpack.c.h.b16 %v115
    %v509 = vunpack.c.l.b16 %v116
    %v510 = vunpack.c.h.b16 %v116
    %v511 = vunpack.c.l.b16 %v117
    %v512 = vunpack.c.h.b16 %v117
    %v513 = vunpack.c.l.b16 %v118
    %v514 = vunpack.c.h.b16 %v118
    %v515 = vunpack.c.l.b16 %v119
    %v516 = vunpack.c.h.b16 %v119
    %v517 = vunpack.c.l.b16 %v120
    %v518 = vunpack.c.h.b16 %v120
    %v519 = vunpack.c.l.b16 %v121
    %v520 = vunpack.c.h.b16 %v121
    %v521 = vunpack.c.l.b16 %v122
    %v522 = vunpack.c.h.b16 %v122
    %v523 = vunpack.c.l.b16 %v123
    %v524 = vunpack.c.h.b16 %v123
    %v525 = vunpack.c.l.b16 %v124
    %v526 = vunpack.c.h.b16 %v124
    %v527 = vunpack.c.l.b16 %v125
    %v528 = vunpack.c.h.b16 %v125
    %v529 = vunpack.c.l.b16 %v126
    %v530 = vunpack.c.h.b16 %v126
    %v531 = vunpack.c.l.b16 %v127
    %v532 = vunpack.c.h.b16 %v127
    %v533 = vunpack.c.l.b16 %v128
    %v534 = vunpack.c.h.b16 %v128
    %v535 = vunpack.c.l.b16 %v129
    %v536 = vunpack.c.h.b16 %v129
    %v537 = vunpack.c.l.b16 %v130
    %v538 = vunpack.c.h.b16 %v130
    %v539 = vunpack.c.l.b16 %v131
    %v540 = vunpack.c.h.b16 %v131
    %v541 = vunpack.c.l.b16 %v132
    %v542 = vunpack.c.h.b16 %v132
    %v543 = vunpack.c.l.b16 %v133
    %v544 = vunpack.c.h.b16 %v133
    %v545 = vunpack.c.l.b16 %v134
    %v546 = vunpack.c.h.b16 %v134
    %v547 = vunpack.c.l.b16 %v135
    %v548 = vunpack.c.h.b16 %v135
    %v549 = vunpack.c.l.b16 %v136
    %v550 = vunpack.c.h.b16 %v136
    %v551 = vunpack.c.l.b16 %v137
    %v552 = vunpack.c.h.b16 %v137
    %v553 = vunpack.c.l.b16 %v138
    %v554 = vunpack.c.h.b16 %v138
    %v555 = vunpack.c.l.b16 %v139
    %v556 = vunpack.c.h.b16 %v139
    %v557 = vunpack.c.l.b16 %v140
    %v558 = vunpack.c.h.b16 %v140
    %v559 = vunpack.c.l.b16 %v141
    %v560 = vunpack.c.h.b16 %v141
    %v561 = vunpack.c.l.b16 %v142
    %v562 = vunpack.c.h.b16 %v142
    %v563 = vunpack.c.l.b16 %v143
    %v564 = vunpack.c.h.b16 %v143
    %v565 = vunpack.c.l.b16 %v144
    %v566 = vunpack.c.h.b16 %v144
    %v567 = vunpack.c.l.b16 %v145
    %v568 = vunpack.c.h.b16 %v145
    %v569 = vunpack.c.l.b16 %v146
    %v570 = vunpack.c.h.b16 %v146
    %v571 = vunpack.c.l.b16 %v147
    %v572 = vunpack.c.h.b16 %v147
    %v573 = vunpack.c.l.b16 %v148
    %v574 = vunpack.c.h.b16 %v148
    %v575 = vunpack.c.l.b16 %v149
    %v576 = vunpack.c.h.b16 %v149
    %v577 = vunpack.c.l.b16 %v150
    %v578 = vunpack.c.h.b16 %v150
    %v579 = vunpack.c.l.b16 %v151
    %v580 = vunpack.c.h.b16 %v151
    %v581 = vunpack.c.l.b16 %v152
    %v582 = vunpack.c.h.b16 %v152
    %v583 = vunpack.c.l.b16 %v153
    %v584 = vunpack.c.h.b16 %v153
    %v585 = vunpack.c.l.b16 %v154
    %v586 = vunpack.c.h.b16 %v154
    %v587 = vunpack.c.l.b16 %v155
    %v588 = vunpack.c.h.b16 %v155
    %v589 = vunpack.c.l.b16 %v156
    %v590 = vunpack.c.h.b16 %v156
    %v591 = vunpack.c.l.b16 %v157
    %v592 = vunpack.c.h.b16 %v157
    %v593 = vunpack.c.l.b16 %v158
    %v594 = vunpack.c.h.b16 %v158
    %v595 = vunpack.c.l.b16 %v159
    %v596 = vunpack.c.h.b16 %v159
    %v597 = vunpack.c.l.b16 %v160
    %v598 = vunpack.c.h.b16 %v160
    %v599 = vunpack.c.l.b16 %v161
    %v600 = vunpack.c.h.b16 %v161
    %v601 = vunpack.c.l.b16 %v162
    %v602 = vunpack.c.h.b16 %v162
    %v603 = vunpack.c.l.b16 %v163
    %v604 = vunpack.c.h.b16 %v163
    %v605 = vunpack.c.l.b16 %v164
    %v606 = vunpack.c.h.b16 %v164
    %v607 = vunpack.c.l.b16 %v165
    %v608 = vunpack.c.h.b16 %v165
    %v609 = vunpack.c.l.b16 %v166
    %v610 = vunpack.c.h.b16 %v166
    %v611 = vunpack.c.l.b16 %v167
    %v612 = vunpack.c.h.b16 %v167
    %v613 = vunpack.c.l.b16 %v168
    %v614 = vunpack.c.h.b16 %v168
    %v615 = vunpack.c.l.b16 %v169
    %v616 = vunpack.c.h.b16 %v169
    %v617 = vunpack.c.l.b16 %v170
    %v618 = vunpack.c.h.b16 %v170
    %v619 = vunpack.c.l.b16 %v171
    %v620 = vunpack.c.h.b16 %v171
    %v621 = vunpack.c.l.b16 %v172
    %v622 = vunpack.c.h.b16 %v172
    %v623 = vunpack.c.l.b16 %v173
    %v624 = vunpack.c.h.b16 %v173
    %v625 = vunpack.c.l.b16 %v174
    %v626 = vunpack.c.h.b16 %v174
    %v627 = vunpack.c.l.b16 %v175
    %v628 = vunpack.c.h.b16 %v175
    %v629 = vunpack.c.l.b16 %v176
    %v630 = vunpack.c.h.b16 %v176
    %v631 = vpack.c.b16 %v377, %v375
    %v632 = vpack.c.b16 %v378, %v376
    %v633 = vpack.c.b16 %v381, %v379
    %v634 = vpack.c.b16 %v382, %v380
    %v635 = vpack.c.b16 %v385, %v383
    %v636 = vpack.c.b16 %v386, %v384
    %v637 = vpack.c.b16 %v389, %v387
    %v638 = vpack.c.b16 %v390, %v388
    %v639 = vpack.c.b16 %v393, %v391
    %v640 = vpack.c.b16 %v394, %v392
    %v641 = vpack.c.b16 %v397, %v395
    %v642 = vpack.c.b16 %v398, %v396
    %v643 = vpack.c.b16 %v401, %v399
    %v644 = vpack.c.b16 %v402, %v400
    %v645 = vpack.c.b16 %v405, %v403
    %v646 = vpack.c.b16 %v406, %v404
    %v647 = vpack.c.b16 %v409, %v407
    %v648 = vpack.c.b16 %v410, %v408
    %v649 = vpack.c.b16 %v413, %v411
    %v650 = vpack.c.b16 %v414, %v412
    %v651 = vpack.c.b16 %v417, %v415
    %v652 = vpack.c.b16 %v418, %v416
    %v653 = vpack.c.b16 %v421, %v419
    %v654 = vpack.c.b16 %v422, %v420
    %v655 = vpack.c.b16 %v425, %v423
    %v656 = vpack.c.b16 %v426, %v424
    %v657 = vpack.c.b16 %v429, %v427
    %v658 = vpack.c.b16 %v430, %v428
    %v659 = vpack.c.b16 %v433, %v431
    %v660 = vpack.c.b16 %v434, %v432
    %v661 = vpack.c.b16 %v437, %v435
    %v662 = vpack.c.b16 %v438, %v436
    %v663 = vpack.c.b16 %v441, %v439
    %v664 = vpack.c.b16 %v442, %v440
    %v665 = vpack.c.b16 %v445, %v443
    %v666 = vpack.c.b16 %v446, %v444
    %v667 = vpack.c.b16 %v449, %v447
    %v668 = vpack.c.b16 %v450, %v448
    %v669 = vpack.c.b16 %v453, %v451
    %v670 = vpack.c.b16 %v454, %v452
    %v671 = vpack.c.b16 %v457, %v455
    %v672 = vpack.c.b16 %v458, %v456
    %v673 = vpack.c.b16 %v461, %v459
    %v674 = vpack.c.b16 %v462, %v460
    %v675 = vpack.c.b16 %v465, %v463
    %v676 = vpack.c.b16 %v466, %v464
    %v677 = vpack.c.b16 %v469, %v467
    %v678 = vpack.c.b16 %v470, %v468
    %v679 = vpack.c.b16 %v473, %v471
    %v680 = vpack.c.b16 %v474, %v472
    %v681 = vpack.c.b16 %v477, %v475
    %v682 = vpack.c.b16 %v478, %v476
    %v683 = vpack.c.b16 %v481, %v479
    %v684 = vpack.c.b16 %v482, %v480
    %v685 = vpack.c.b16 %v485, %v483
    %v686 = vpack.c.b16 %v486, %v484
    %v687 = vpack.c.b16 %v489, %v487
    %v688 = vpack.c.b16 %v490, %v488
    %v689 = vpack.c.b16 %v493, %v491
    %v690 = vpack.c.b16 %v494, %v492
    %v691 = vpack.c.b16 %v497, %v495
    %v692 = vpack.c.b16 %v498, %v496
    %v693 = vpack.c.b16 %v501, %v499
    %v694 = vpack.c.b16 %v502, %v500
    %v695 = vpack.c.b16 %v505, %v503
    %v696 = vpack.c.b16 %v506, %v504
    %v697 = vpack.c.b16 %v509, %v507
    %v698 = vpack.c.b16 %v510, %v508
    %v699 = vpack.c.b16 %v513, %v511
    %v700 = vpack.c.b16 %v514, %v512
    %v701 = vpack.c.b16 %v517, %v515
    %v702 = vpack.c.b16 %v518, %v516
    %v703 = vpack.c.b16 %v521, %v519
    %v704 = vpack.c.b16 %v522, %v520
    %v705 = vpack.c.b16 %v525, %v523
    %v706 = vpack.c.b16 %v526, %v524
    %v707 = vpack.c.b16 %v529, %v527
    %v708 = vpack.c.b16 %v530, %v528
    %v709 = vpack.c.b16 %v533, %v531
    %v710 = vpack.c.b16 %v534, %v532
    %v711 = vpack.c.b16 %v537, %v535
    %v712 = vpack.c.b16 %v538, %v536
    %v713 = vpack.c.b16 %v541, %v539
    %v714 = vpack.c.b16 %v542, %v540
    %v715 = vpack.c.b16 %v545, %v543
    %v716 = vpack.c.b16 %v546, %v544
    %v717 = vpack.c.b16 %v549, %v547
    %v718 = vpack.c.b16 %v550, %v548
    %v719 = vpack.c.b16 %v553, %v551
    %v720 = vpack.c.b16 %v554, %v552
    %v721 = vpack.c.b16 %v557, %v555
    %v722 = vpack.c.b16 %v558, %v556
    %v723 = vpack.c.b16 %v561, %v559
    %v724 = vpack.c.b16 %v562, %v560
    %v725 = vpack.c.b16 %v565, %v563
    %v726 = vpack.c.b16 %v566, %v564
    %v727 = vpack.c.b16 %v569, %v567
    %v728 = vpack.c.b16 %v570, %v568
    %v729 = vpack.c.b16 %v573, %v571
    %v730 = vpack.c.b16 %v574, %v572
    %v731 = vpack.c.b16 %v577, %v575
    %v732 = vpack.c.b16 %v578, %v576
    %v733 = vpack.c.b16 %v581, %v579
    %v734 = vpack.c.b16 %v582, %v580
    %v735 = vpack.c.b16 %v585, %v583
    %v736 = vpack.c.b16 %v586, %v584
    %v737 = vpack.c.b16 %v589, %v587
    %v738 = vpack.c.b16 %v590, %v588
    %v739 = vpack.c.b16 %v593, %v591
    %v740 = vpack.c.b16 %v594, %v592
    %v741 = vpack.c.b16 %v597, %v595
    %v742 = vpack.c.b16 %v598, %v596
    %v743 = vpack.c.b16 %v601, %v599
    %v744 = vpack.c.b16 %v602, %v600
    %v745 = vpack.c.b16 %v605, %v603
    %v746 = vpack.c.b16 %v606, %v604
    %v747 = vpack.c.b16 %v609, %v607
    %v748 = vpack.c.b16 %v610, %v608
    %v749 = vpack.c.b16 %v613, %v611
    %v750 = vpack.c.b16 %v614, %v612
    %v751 = vpack.c.b16 %v617, %v615
    %v752 = vpack.c.b16 %v618, %v616
    %v753 = vpack.c.b16 %v621, %v619
    %v754 = vpack.c.b16 %v622, %v620
    %v755 = vpack.c.b16 %v625, %v623
    %v756 = vpack.c.b16 %v626, %v624
    %v757 = vpack.c.b16 %v629, %v627
    %v758 = vpack.c.b16 %v630, %v628
    %887 = vmatprep.subr.bf16.mxu0 %v632
    %888 = vmatpush1.bf16.msra.mxu0 %v631
    %889 = vmatprep.subr.bf16.mxu0 %v634
    %890 = vmatpush1.bf16.msra.mxu0 %v633
    %891 = vmatprep.subr.bf16.mxu0 %v636
    %892 = vmatpush1.bf16.msra.mxu0 %v635
    %893 = vmatprep.subr.bf16.mxu0 %v638
    %894 = vmatpush1.bf16.msra.mxu0 %v637
    %895 = vmatprep.subr.bf16.mxu0 %v640
    %896 = vmatpush1.bf16.msra.mxu0 %v639
    %897 = vmatprep.subr.bf16.mxu0 %v642
    %898 = vmatpush1.bf16.msra.mxu0 %v641
    %899 = vmatprep.subr.bf16.mxu0 %v644
    %900 = vmatpush1.bf16.msra.mxu0 %v643
    %901 = vmatprep.subr.bf16.mxu0 %v646
    %902 = vmatpush1.bf16.msra.mxu0 %v645
    %903 = vmatprep.subr.bf16.mxu0 %v648
    %904 = vmatpush1.bf16.msra.mxu0 %v647
    %905 = vmatprep.subr.bf16.mxu0 %v650
    %906 = vmatpush1.bf16.msra.mxu0 %v649
    %907 = vmatprep.subr.bf16.mxu0 %v652
    %908 = vmatpush1.bf16.msra.mxu0 %v651
    %909 = vmatprep.subr.bf16.mxu0 %v654
    %910 = vmatpush1.bf16.msra.mxu0 %v653
    %911 = vmatprep.subr.bf16.mxu0 %v656
    %912 = vmatpush1.bf16.msra.mxu0 %v655
    %913 = vmatprep.subr.bf16.mxu0 %v658
    %914 = vmatpush1.bf16.msra.mxu0 %v657
    %915 = vmatprep.subr.bf16.mxu0 %v660
    %916 = vmatpush1.bf16.msra.mxu0 %v659
    %917 = vmatprep.subr.bf16.mxu0 %v662
    %918 = vmatpush1.bf16.msra.mxu0 %v661
    %919 = vmatprep.mubr.bf16.mxu0 %v227
    %920 = vmatmul.mubr.bf16.gmra.mrb[0].mxu0 %v213
    %v921 = vpop.f32.mrb[0].mxu0
    %v922 = vadd.f32 %v182, %v921
    %v923 = vpop.f32.mrb[0].mxu0
    %v924 = vadd.f32 %v186, %v923
    %v925 = vpop.f32.mrb[0].mxu0
    %v926 = vpop.f32.mrb[0].mxu0
    %927 = vdwg.mxu0
    %928 = vmatprep.subr.bf16.mxu0 %v664
    %929 = vmatpush1.bf16.msra.mxu0 %v663
    %930 = vmatprep.subr.bf16.mxu0 %v666
    %931 = vmatpush1.bf16.msra.mxu0 %v665
    %932 = vmatprep.subr.bf16.mxu0 %v668
    %933 = vmatpush1.bf16.msra.mxu0 %v667
    %934 = vmatprep.subr.bf16.mxu0 %v670
    %935 = vmatpush1.bf16.msra.mxu0 %v669
    %936 = vmatprep.subr.bf16.mxu0 %v672
    %937 = vmatpush1.bf16.msra.mxu0 %v671
    %938 = vmatprep.subr.bf16.mxu0 %v674
    %939 = vmatpush1.bf16.msra.mxu0 %v673
    %940 = vmatprep.subr.bf16.mxu0 %v676
    %941 = vmatpush1.bf16.msra.mxu0 %v675
    %942 = vmatprep.subr.bf16.mxu0 %v678
    %943 = vmatpush1.bf16.msra.mxu0 %v677
    %944 = vmatprep.subr.bf16.mxu0 %v680
    %945 = vmatpush1.bf16.msra.mxu0 %v679
    %946 = vmatprep.subr.bf16.mxu0 %v682
    %947 = vmatpush1.bf16.msra.mxu0 %v681
    %948 = vmatprep.subr.bf16.mxu0 %v684
    %949 = vmatpush1.bf16.msra.mxu0 %v683
    %950 = vmatprep.subr.bf16.mxu0 %v686
    %951 = vmatpush1.bf16.msra.mxu0 %v685
    %952 = vmatprep.subr.bf16.mxu0 %v688
    %953 = vmatpush1.bf16.msra.mxu0 %v687
    %954 = vmatprep.subr.bf16.mxu0 %v690
    %955 = vmatpush1.bf16.msra.mxu0 %v689
    %956 = vmatprep.subr.bf16.mxu0 %v692
    %957 = vmatpush1.bf16.msra.mxu0 %v691
    %958 = vmatprep.subr.bf16.mxu0 %v694
    %959 = vmatpush1.bf16.msra.mxu0 %v693
    %960 = vmatprep.mubr.bf16.mxu0 %v237
    %961 = vmatmul.mubr.bf16.gmra.mrb[0].mxu0 %v235
    %v962 = vpop.f32.mrb[0].mxu0
    %v963 = vadd.f32 %v922, %v962
    %v964 = vpop.f32.mrb[0].mxu0
    %v965 = vadd.f32 %v924, %v964
    %v966 = vpop.f32.mrb[0].mxu0
    %v967 = vpop.f32.mrb[0].mxu0
    %968 = vdwg.mxu0
    %969 = vmatprep.subr.bf16.mxu0 %v696
    %970 = vmatpush1.bf16.msra.mxu0 %v695
    %971 = vmatprep.subr.bf16.mxu0 %v698
    %972 = vmatpush1.bf16.msra.mxu0 %v697
    %973 = vmatprep.subr.bf16.mxu0 %v700
    %974 = vmatpush1.bf16.msra.mxu0 %v699
    %975 = vmatprep.subr.bf16.mxu0 %v702
    %976 = vmatpush1.bf16.msra.mxu0 %v701
    %977 = vmatprep.subr.bf16.mxu0 %v704
    %978 = vmatpush1.bf16.msra.mxu0 %v703
    %979 = vmatprep.subr.bf16.mxu0 %v706
    %980 = vmatpush1.bf16.msra.mxu0 %v705
    %981 = vmatprep.subr.bf16.mxu0 %v708
    %982 = vmatpush1.bf16.msra.mxu0 %v707
    %983 = vmatprep.subr.bf16.mxu0 %v710
    %984 = vmatpush1.bf16.msra.mxu0 %v709
    %985 = vmatprep.subr.bf16.mxu0 %v712
    %986 = vmatpush1.bf16.msra.mxu0 %v711
    %987 = vmatprep.subr.bf16.mxu0 %v714
    %988 = vmatpush1.bf16.msra.mxu0 %v713
    %989 = vmatprep.subr.bf16.mxu0 %v716
    %990 = vmatpush1.bf16.msra.mxu0 %v715
    %991 = vmatprep.subr.bf16.mxu0 %v718
    %992 = vmatpush1.bf16.msra.mxu0 %v717
    %993 = vmatprep.subr.bf16.mxu0 %v720
    %994 = vmatpush1.bf16.msra.mxu0 %v719
    %995 = vmatprep.subr.bf16.mxu0 %v722
    %996 = vmatpush1.bf16.msra.mxu0 %v721
    %997 = vmatprep.subr.bf16.mxu0 %v724
    %998 = vmatpush1.bf16.msra.mxu0 %v723
    %999 = vmatprep.subr.bf16.mxu0 %v726
    %1000 = vmatpush1.bf16.msra.mxu0 %v725
    %1001 = vmatprep.mubr.bf16.mxu0 %v234
    %1002 = vmatmul.mubr.bf16.gmra.mrb[0].mxu0 %v220
    %v1003 = vpop.f32.mrb[0].mxu0
    %v1004 = vadd.f32 %v963, %v1003
    %v1005 = vpop.f32.mrb[0].mxu0
    %v1006 = vadd.f32 %v965, %v1005
    %v1007 = vpop.f32.mrb[0].mxu0
    %v1008 = vpop.f32.mrb[0].mxu0
    %1009 = vdwg.mxu0
    %1010 = vmatprep.subr.bf16.mxu0 %v728
    %1011 = vmatpush1.bf16.msra.mxu0 %v727
    %1012 = vmatprep.subr.bf16.mxu0 %v730
    %1013 = vmatpush1.bf16.msra.mxu0 %v729
    %1014 = vmatprep.subr.bf16.mxu0 %v732
    %1015 = vmatpush1.bf16.msra.mxu0 %v731
    %1016 = vmatprep.subr.bf16.mxu0 %v734
    %1017 = vmatpush1.bf16.msra.mxu0 %v733
    %1018 = vmatprep.subr.bf16.mxu0 %v736
    %1019 = vmatpush1.bf16.msra.mxu0 %v735
    %1020 = vmatprep.subr.bf16.mxu0 %v738
    %1021 = vmatpush1.bf16.msra.mxu0 %v737
    %1022 = vmatprep.subr.bf16.mxu0 %v740
    %1023 = vmatpush1.bf16.msra.mxu0 %v739
    %1024 = vmatprep.subr.bf16.mxu0 %v742
    %1025 = vmatpush1.bf16.msra.mxu0 %v741
    %1026 = vmatprep.subr.bf16.mxu0 %v744
    %1027 = vmatpush1.bf16.msra.mxu0 %v743
    %1028 = vmatprep.subr.bf16.mxu0 %v746
    %1029 = vmatpush1.bf16.msra.mxu0 %v745
    %1030 = vmatprep.subr.bf16.mxu0 %v748
    %1031 = vmatpush1.bf16.msra.mxu0 %v747
    %1032 = vmatprep.subr.bf16.mxu0 %v750
    %1033 = vmatpush1.bf16.msra.mxu0 %v749
    %1034 = vmatprep.subr.bf16.mxu0 %v752
    %1035 = vmatpush1.bf16.msra.mxu0 %v751
    %1036 = vmatprep.subr.bf16.mxu0 %v754
    %1037 = vmatpush1.bf16.msra.mxu0 %v753
    %1038 = vmatprep.subr.bf16.mxu0 %v756
    %1039 = vmatpush1.bf16.msra.mxu0 %v755
    %1040 = vmatprep.subr.bf16.mxu0 %v758
    %1041 = vmatpush1.bf16.msra.mxu0 %v757
    %1042 = vmatprep.mubr.bf16.mxu0 %v238
    %1043 = vmatmul.mubr.bf16.gmra.mrb[0].mxu0 %v236
    %v1044 = vpop.f32.mrb[0].mxu0
    %v1045 = vadd.f32 %v1004, %v1044
    %v1046 = vpop.f32.mrb[0].mxu0
    %v1047 = vadd.f32 %v1006, %v1046
    %v1048 = vpop.f32.mrb[0].mxu0
    %v1049 = vpop.f32.mrb[0].mxu0
    %1050 = vdwg.mxu0
    %v1051 = vmax.f32 %v1045, 0.0
    %v1052 = vmax.f32 %v1047, 0.0
    %v1053 = vpack.c.bf16 %v1051, %v1051
    %v1054 = vpack.c.bf16 %v1052, %v1052
    %v1055 = vld [vmem:[%s3] sm:$0xf]
    %v1056 = vld [vmem:[%s3 + $0x4] sm:$0xf]
    %v1057 = vld [vmem:[%s3 + $0x8] sm:$0xf]
    %v1058 = vld [vmem:[%s3 + $0xc] sm:$0xf]
    %v1059 = vld [vmem:[%s3 + $0x10] sm:$0xf]
    %v1060 = vld [vmem:[%s3 + $0x14] sm:$0xf]
    %v1061 = vld [vmem:[%s3 + $0x18] sm:$0xf]
    %v1062 = vld [vmem:[%s3 + $0x1c] sm:$0xf]
    %v1063 = vld [vmem:[%s3 + $0x20] sm:$0xf]
    %v1064 = vld [vmem:[%s3 + $0x24] sm:$0xf]
    %v1065 = vld [vmem:[%s3 + $0x28] sm:$0xf]
    %v1066 = vld [vmem:[%s3 + $0x2c] sm:$0xf]
    %v1067 = vld [vmem:[%s3 + $0x30] sm:$0xf]
    %v1068 = vld [vmem:[%s3 + $0x34] sm:$0xf]
    %v1069 = vld [vmem:[%s3 + $0x38] sm:$0xf]
    %v1070 = vld [vmem:[%s3 + $0x3c] sm:$0xf]
    %v1071 = vld [vmem:[%s3 + $0x40] sm:$0xf]
    %v1072 = vld [vmem:[%s3 + $0x44] sm:$0xf]
    %v1073 = vld [vmem:[%s3 + $0x48] sm:$0xf]
    %v1074 = vld [vmem:[%s3 + $0x4c] sm:$0xf]
    %v1075 = vld [vmem:[%s3 + $0x50] sm:$0xf]
    %v1076 = vld [vmem:[%s3 + $0x54] sm:$0xf]
    %v1077 = vld [vmem:[%s3 + $0x58] sm:$0xf]
    %v1078 = vld [vmem:[%s3 + $0x5c] sm:$0xf]
    %v1079 = vld [vmem:[%s3 + $0x60] sm:$0xf]
    %v1080 = vld [vmem:[%s3 + $0x64] sm:$0xf]
    %v1081 = vld [vmem:[%s3 + $0x68] sm:$0xf]
    %v1082 = vld [vmem:[%s3 + $0x6c] sm:$0xf]
    %v1083 = vld [vmem:[%s3 + $0x70] sm:$0xf]
    %v1084 = vld [vmem:[%s3 + $0x74] sm:$0xf]
    %v1085 = vld [vmem:[%s3 + $0x78] sm:$0xf]
    %v1086 = vld [vmem:[%s3 + $0x7c] sm:$0xf]
    %v1087 = vld [vmem:[%s4] sm:$0x1]
    %v1089 = vlaneseq
    %v1090 = vshrl.u32 %v1089, 7
    %v1091 = vsub.s32 0, %v1090
    %v1092 = vrot.slane %v1087, %v1091
    %v1126 = vunpack.c.l.b16 %v1055
    %v1127 = vunpack.c.l.b16 %v1056
    %v1128 = vunpack.c.l.b16 %v1057
    %v1129 = vunpack.c.l.b16 %v1058
    %v1130 = vunpack.c.l.b16 %v1059
    %v1131 = vunpack.c.l.b16 %v1060
    %v1132 = vunpack.c.l.b16 %v1061
    %v1133 = vunpack.c.l.b16 %v1062
    %v1134 = vunpack.c.l.b16 %v1063
    %v1135 = vunpack.c.l.b16 %v1064
    %v1136 = vunpack.c.l.b16 %v1065
    %v1137 = vunpack.c.l.b16 %v1066
    %v1138 = vunpack.c.l.b16 %v1067
    %v1139 = vunpack.c.l.b16 %v1068
    %v1140 = vunpack.c.l.b16 %v1069
    %v1141 = vunpack.c.l.b16 %v1070
    %v1142 = vunpack.c.l.b16 %v1071
    %v1143 = vunpack.c.l.b16 %v1072
    %v1144 = vunpack.c.l.b16 %v1073
    %v1145 = vunpack.c.l.b16 %v1074
    %v1146 = vunpack.c.l.b16 %v1075
    %v1147 = vunpack.c.l.b16 %v1076
    %v1148 = vunpack.c.l.b16 %v1077
    %v1149 = vunpack.c.l.b16 %v1078
    %v1150 = vunpack.c.l.b16 %v1079
    %v1151 = vunpack.c.l.b16 %v1080
    %v1152 = vunpack.c.l.b16 %v1081
    %v1153 = vunpack.c.l.b16 %v1082
    %v1154 = vunpack.c.l.b16 %v1083
    %v1155 = vunpack.c.l.b16 %v1084
    %v1156 = vunpack.c.l.b16 %v1085
    %v1157 = vunpack.c.l.b16 %v1086
    %v1158 = vpack.c.b16 %v1127, %v1126
    %v1159 = vpack.c.b16 %v1129, %v1128
    %v1160 = vpack.c.b16 %v1131, %v1130
    %v1161 = vpack.c.b16 %v1133, %v1132
    %v1162 = vpack.c.b16 %v1135, %v1134
    %v1163 = vpack.c.b16 %v1137, %v1136
    %v1164 = vpack.c.b16 %v1139, %v1138
    %v1165 = vpack.c.b16 %v1141, %v1140
    %v1166 = vpack.c.b16 %v1143, %v1142
    %v1167 = vpack.c.b16 %v1145, %v1144
    %v1168 = vpack.c.b16 %v1147, %v1146
    %v1169 = vpack.c.b16 %v1149, %v1148
    %v1170 = vpack.c.b16 %v1151, %v1150
    %v1171 = vpack.c.b16 %v1153, %v1152
    %v1172 = vpack.c.b16 %v1155, %v1154
    %v1173 = vpack.c.b16 %v1157, %v1156
    %1190 = vmatprep.subr.bf16.mxu0 0
    %1191 = vmatpush1.bf16.msra.mxu0 %v1158
    %1192 = vmatprep.subr.bf16.mxu0 0
    %1193 = vmatpush1.bf16.msra.mxu0 %v1159
    %1194 = vmatprep.subr.bf16.mxu0 0
    %1195 = vmatpush1.bf16.msra.mxu0 %v1160
    %1196 = vmatprep.subr.bf16.mxu0 0
    %1197 = vmatpush1.bf16.msra.mxu0 %v1161
    %1198 = vmatprep.subr.bf16.mxu0 0
    %1199 = vmatpush1.bf16.msra.mxu0 %v1162
    %1200 = vmatprep.subr.bf16.mxu0 0
    %1201 = vmatpush1.bf16.msra.mxu0 %v1163
    %1202 = vmatprep.subr.bf16.mxu0 0
    %1203 = vmatpush1.bf16.msra.mxu0 %v1164
    %1204 = vmatprep.subr.bf16.mxu0 0
    %1205 = vmatpush1.bf16.msra.mxu0 %v1165
    %1206 = vmatprep.subr.bf16.mxu0 0
    %1207 = vmatpush1.bf16.msra.mxu0 %v1166
    %1208 = vmatprep.subr.bf16.mxu0 0
    %1209 = vmatpush1.bf16.msra.mxu0 %v1167
    %1210 = vmatprep.subr.bf16.mxu0 0
    %1211 = vmatpush1.bf16.msra.mxu0 %v1168
    %1212 = vmatprep.subr.bf16.mxu0 0
    %1213 = vmatpush1.bf16.msra.mxu0 %v1169
    %1214 = vmatprep.subr.bf16.mxu0 0
    %1215 = vmatpush1.bf16.msra.mxu0 %v1170
    %1216 = vmatprep.subr.bf16.mxu0 0
    %1217 = vmatpush1.bf16.msra.mxu0 %v1171
    %1218 = vmatprep.subr.bf16.mxu0 0
    %1219 = vmatpush1.bf16.msra.mxu0 %v1172
    %1220 = vmatprep.subr.bf16.mxu0 0
    %1221 = vmatpush1.bf16.msra.mxu0 %v1173
    %1222 = vmatprep.mubr.bf16.mxu0 %v1054
    %1223 = vmatmul.mubr.bf16.gmra.mrb[0].mxu0 %v1053
    %v1224 = vpop.f32.mrb[0].mxu0
    %v1225 = vadd.f32 %v1092, %v1224
    %v1226 = vpop.f32.mrb[0].mxu0
    %v1227 = vpop.f32.mrb[0].mxu0
    %v1228 = vpop.f32.mrb[0].mxu0
    %1229 = vdwg.mxu0
    %v1230 = vmax.f32 %v1225, 0.0
    %v1231 = vpack.c.bf16 %v1230, %v1230
    %v1232 = vld [vmem:[%s5] sm:$0xf]
    %v1233 = vld [vmem:[%s5 + $0x4] sm:$0xf]
    %v1234 = vld [vmem:[%s5 + $0x8] sm:$0xf]
    %v1235 = vld [vmem:[%s5 + $0xc] sm:$0xf]
    %v1236 = vld [vmem:[%s5 + $0x10] sm:$0xf]
    %v1237 = vld [vmem:[%s5 + $0x14] sm:$0xf]
    %v1238 = vld [vmem:[%s5 + $0x18] sm:$0xf]
    %v1239 = vld [vmem:[%s5 + $0x1c] sm:$0xf]
    %v1240 = vld [vmem:[%s6] sm:$0x1]
    %v1242 = vlaneseq
    %v1243 = vshrl.u32 %v1242, 7
    %v1244 = vsub.s32 0, %v1243
    %v1245 = vrot.slane %v1240, %v1244
    %v1255 = vunpack.c.l.b16 %v1232
    %v1256 = vunpack.c.l.b16 %v1233
    %v1257 = vunpack.c.l.b16 %v1234
    %v1258 = vunpack.c.l.b16 %v1235
    %v1259 = vunpack.c.l.b16 %v1236
    %v1260 = vunpack.c.l.b16 %v1237
    %v1261 = vunpack.c.l.b16 %v1238
    %v1262 = vunpack.c.l.b16 %v1239
    %v1263 = vpack.c.b16 %v1256, %v1255
    %v1264 = vpack.c.b16 %v1258, %v1257
    %v1265 = vpack.c.b16 %v1260, %v1259
    %v1266 = vpack.c.b16 %v1262, %v1261
    %vm1271 = vcmask 523264
    %v1273 = vsel %vm1271, %v1231, 0
    %1275 = vmatprep.subr.bf16.mxu0 0
    %1276 = vmatpush1.bf16.msra.mxu0 %v1263
    %1277 = vmatprep.subr.bf16.mxu0 0
    %1278 = vmatpush1.bf16.msra.mxu0 %v1264
    %1279 = vmatprep.subr.bf16.mxu0 0
    %1280 = vmatpush1.bf16.msra.mxu0 %v1265
    %1281 = vmatprep.subr.bf16.mxu0 0
    %1282 = vmatpush1.bf16.msra.mxu0 %v1266
    %1283 = vmatprep.subr.bf16.mxu0 0
    %1284 = vmatpush1.bf16.msra.mxu0 0
    %1285 = vmatprep.subr.bf16.mxu0 0
    %1286 = vmatpush1.bf16.msra.mxu0 0
    %1287 = vmatprep.subr.bf16.mxu0 0
    %1288 = vmatpush1.bf16.msra.mxu0 0
    %1289 = vmatprep.subr.bf16.mxu0 0
    %1290 = vmatpush1.bf16.msra.mxu0 0
    %1291 = vmatprep.subr.bf16.mxu0 0
    %1292 = vmatpush1.bf16.msra.mxu0 0
    %1293 = vmatprep.subr.bf16.mxu0 0
    %1294 = vmatpush1.bf16.msra.mxu0 0
    %1295 = vmatprep.subr.bf16.mxu0 0
    %1296 = vmatpush1.bf16.msra.mxu0 0
    %1297 = vmatprep.subr.bf16.mxu0 0
    %1298 = vmatpush1.bf16.msra.mxu0 0
    %1299 = vmatprep.subr.bf16.mxu0 0
    %1300 = vmatpush1.bf16.msra.mxu0 0
    %1301 = vmatprep.subr.bf16.mxu0 0
    %1302 = vmatpush1.bf16.msra.mxu0 0
    %1303 = vmatprep.subr.bf16.mxu0 0
    %1304 = vmatpush1.bf16.msra.mxu0 0
    %1305 = vmatprep.subr.bf16.mxu0 0
    %1306 = vmatpush1.bf16.msra.mxu0 0
    %1307 = vmatprep.mubr.bf16.mxu0 0
    %1308 = vmatmul.mubr.bf16.gmra.mrb[0].mxu0 %v1273
    %v1309 = vpop.f32.mrb[0].mxu0
    %v1310 = vadd.f32 %v1245, %v1309
    %v1311 = vpop.f32.mrb[0].mxu0
    %v1312 = vpop.f32.mrb[0].mxu0
    %v1313 = vpop.f32.mrb[0].mxu0
    %1314 = vdwg.mxu0
    %v1315 = vmax.f32 %v1310, 0.0
    %v1316 = vpack.c.bf16 %v1315, %v1315
    %v1317 = vld [vmem:[%s7] sm:$0xf]
    %v1318 = vld [vmem:[%s7 + $0x4] sm:$0xf]
    %v1319 = vld [vmem:[%s7 + $0x8] sm:$0xf]
    %v1320 = vld [vmem:[%s7 + $0xc] sm:$0xf]
    %v1321 = vld [vmem:[%s7 + $0x10] sm:$0xf]
    %v1322 = vld [vmem:[%s7 + $0x14] sm:$0xf]
    %v1323 = vld [vmem:[%s7 + $0x18] sm:$0xf]
    %v1324 = vld [vmem:[%s7 + $0x1c] sm:$0xf]
    %v1325 = vld [vmem:[%s8] sm:$0x1]
    %v1327 = vlaneseq
    %v1328 = vshrl.u32 %v1327, 7
    %v1329 = vsub.s32 0, %v1328
    %v1330 = vrot.slane %v1325, %v1329
    %v1340 = vunpack.c.l.b16 %v1317
    %v1341 = vunpack.c.l.b16 %v1318
    %v1342 = vunpack.c.l.b16 %v1319
    %v1343 = vunpack.c.l.b16 %v1320
    %v1344 = vunpack.c.l.b16 %v1321
    %v1345 = vunpack.c.l.b16 %v1322
    %v1346 = vunpack.c.l.b16 %v1323
    %v1347 = vunpack.c.l.b16 %v1324
    %v1348 = vpack.c.b16 %v1341, %v1340
    %v1349 = vpack.c.b16 %v1343, %v1342
    %v1350 = vpack.c.b16 %v1345, %v1344
    %v1351 = vpack.c.b16 %v1347, %v1346
    %v1357 = vsel %vm1271, %v1316, 0
    %1359 = vmatprep.subr.bf16.mxu0 0
    %1360 = vmatpush1.bf16.msra.mxu0 %v1348
    %1361 = vmatprep.subr.bf16.mxu0 0
    %1362 = vmatpush1.bf16.msra.mxu0 %v1349
    %1363 = vmatprep.subr.bf16.mxu0 0
    %1364 = vmatpush1.bf16.msra.mxu0 %v1350
    %1365 = vmatprep.subr.bf16.mxu0 0
    %1366 = vmatpush1.bf16.msra.mxu0 %v1351
    %1367 = vmatprep.subr.bf16.mxu0 0
    %1368 = vmatpush1.bf16.msra.mxu0 0
    %1369 = vmatprep.subr.bf16.mxu0 0
    %1370 = vmatpush1.bf16.msra.mxu0 0
    %1371 = vmatprep.subr.bf16.mxu0 0
    %1372 = vmatpush1.bf16.msra.mxu0 0
    %1373 = vmatprep.subr.bf16.mxu0 0
    %1374 = vmatpush1.bf16.msra.mxu0 0
    %1375 = vmatprep.subr.bf16.mxu0 0
    %1376 = vmatpush1.bf16.msra.mxu0 0
    %1377 = vmatprep.subr.bf16.mxu0 0
    %1378 = vmatpush1.bf16.msra.mxu0 0
    %1379 = vmatprep.subr.bf16.mxu0 0
    %1380 = vmatpush1.bf16.msra.mxu0 0
    %1381 = vmatprep.subr.bf16.mxu0 0
    %1382 = vmatpush1.bf16.msra.mxu0 0
    %1383 = vmatprep.subr.bf16.mxu0 0
    %1384 = vmatpush1.bf16.msra.mxu0 0
    %1385 = vmatprep.subr.bf16.mxu0 0
    %1386 = vmatpush1.bf16.msra.mxu0 0
    %1387 = vmatprep.subr.bf16.mxu0 0
    %1388 = vmatpush1.bf16.msra.mxu0 0
    %1389 = vmatprep.subr.bf16.mxu0 0
    %1390 = vmatpush1.bf16.msra.mxu0 0
    %1391 = vmatprep.mubr.bf16.mxu0 0
    %1392 = vmatmul.mubr.bf16.gmra.mrb[0].mxu0 %v1357
    %v1393 = vpop.f32.mrb[0].mxu0
    %v1394 = vadd.f32 %v1330, %v1393
    %v1395 = vpop.f32.mrb[0].mxu0
    %v1396 = vpop.f32.mrb[0].mxu0
    %v1397 = vpop.f32.mrb[0].mxu0
    %1398 = vdwg.mxu0
    %1399 = vst [vmem:[#allocation5] sm:$0x3] %v1394
    // Predicated region
    $region42: #{fused_forward.1} parent=1 // pred_check
      _
    $region43: #{fused_forward.1} parent=1 // pred_check_branch
      %1401 = sbr.rel (0) target = $region45
    $region44: #{fused_forward.1} parent=1 // pred_region
      %s1403 = ssub.s32 32, 32
      %1404 = vsyncadd [#allocation4], %s1403
      %s1406 = sshll.u32 [#allocation5], 4
      %s1407 = int_to_ptr.vmem [resolvable:$true] %s1406
      %1409 = dma.vmem_to_hbm [thread:$0]  %s1407, 32, %s9, [#allocation4]
    $region45: #{fused_forward.1} parent=1 // pred_fallthru
      _
    // Predicated region
    $region46: #{fused_forward.1} parent=1 // pred_check
      _
    $region47: #{fused_forward.1} parent=1 // pred_check_branch
      %1411 = sbr.rel (0) target = $region49
    $region48: #{fused_forward.1} parent=1 // pred_region
      %1412 = dma.done [#allocation4], 32
    $region49: #{fused_forward.1} parent=1 // pred_fallthru
      _
    %1413 = vsyncpa [#allocation3], 1
    %1414 = vsyncpa [#allocation4], 1

</llo_original>
